<compile_context>
chip_gen: v5e
topology: v5e:2x2
jax: 0.10.0
libtpu: 0.0.40
codegen_flags: <defaults>
</compile_context>

<pallas_src>
import math

import jax
import jax.numpy as jnp
from jax import lax
from jax.experimental import pallas as pl
from jax.experimental.pallas import tpu as pltpu

NUM_CIGAR_OPS = 5
VOCAB = NUM_CIGAR_OPS + 1          # 6 (row 5 = mask / padding row)
V_PAD = 8                          # table padded to 8 rows for clean (8,128) tiles
LANE = 128
BLOCK_BYTES = 2 * 1024 * 1024      # ~2 MiB output tile -> near HBM-store roofline


def _round_up(x, m):
    return (x + m - 1) // m * m


def _embed_kernel(idx_ref, tab_ref, out_ref):
    # idx_ref: (TR, P)   int32   -- P tokens packed per lane-dense output row
    # tab_ref: (V_PAD,W) float32 -- each vocab row tiled P times along lanes (resident)
    # out_ref: (TR, W)   float32 -- W = P * D, multiple of 128 (lane-dense stores)
    TR, P = idx_ref.shape
    W = out_ref.shape[1]
    D = W // P

    idx = idx_ref[...]
    # nn.Embedding(padding_idx=-1): -1 is the mask row (index 5).
    idx = jnp.where(idx < 0, VOCAB - 1, idx)

    # Expand each token's index across its D output lanes.
    if P == 1:
        expanded = idx                                    # (TR, 1) broadcasts vs rows
    else:
        lane = lax.broadcasted_iota(jnp.int32, (TR, W), 1)
        expanded = jnp.full((TR, W), VOCAB - 1, jnp.int32)
        for p in range(P):
            seg = (lane >= p * D) & (lane < (p + 1) * D)
            expanded = jnp.where(seg, idx[:, p:p + 1], expanded)

    # VPU select-accumulate over the 6 real vocab rows (no MXU, no one-hot).
    acc = jnp.zeros((TR, W), tab_ref.dtype)
    for v in range(VOCAB):
        acc = jnp.where(expanded == v, tab_ref[v, :][None, :], acc)

    out_ref[...] = acc.astype(out_ref.dtype)


def cigar_embedding(indices, table):
    """indices: int array of any shape, table: (6, D) float32 -> indices.shape + (D,)."""
    assert table.shape[0] == VOCAB
    D = table.shape[1]
    out_shape = tuple(indices.shape) + (D,)

    P = math.lcm(D, LANE) // D          # tokens packed per lane-dense output row
    W = P * D                           # output row width, multiple of 128

    idx_flat = indices.reshape(-1).astype(jnp.int32)
    N = idx_flat.shape[0]
    rows = pl.cdiv(N, P)

    # Row tile: multiple of 8, sized so the output block is ~BLOCK_BYTES
    # (double-buffered output + temporaries stay well under scoped VMEM on
    #  v5e/v6e and under the 64 MiB/TC physical VMEM on v7x).
    tr_cap = max(8, (BLOCK_BYTES // (W * 4)) // 8 * 8)
    tr = min(tr_cap, _round_up(rows, 8))
    rows_padded = _round_up(rows, tr)

    n_padded = rows_padded * P
    pad = n_padded - N
    if pad:
        idx_flat = jnp.concatenate(
            [idx_flat, jnp.full((pad,), VOCAB - 1, jnp.int32)])
    idx2d = idx_flat.reshape(rows_padded, P)

    # Pad table to 8 rows and pre-tile each row P times along lanes (host-side).
    tab = jnp.concatenate(
        [table, jnp.zeros((V_PAD - VOCAB, D), table.dtype)], axis=0)
    tab = jnp.tile(tab, (1, P))                           # (8, W)

    grid = (rows_padded // tr,)

    out = pl.pallas_call(
        _embed_kernel,
        out_shape=jax.ShapeDtypeStruct((rows_padded, W), table.dtype),
        grid_spec=pltpu.PrefetchScalarGridSpec(
            num_scalar_prefetch=0,
            grid=grid,
            in_specs=[
                pl.BlockSpec((tr, P), lambda i: (i, 0)),        # token-index tile
                pl.BlockSpec((V_PAD, W), lambda i: (0, 0)),     # table: constant block
                # index -> fetched once, stays resident across all grid steps
            ],
            out_specs=pl.BlockSpec((tr, W), lambda i: (i, 0)),  # lane-dense writeback
        ),
        compiler_params=pltpu.CompilerParams(
            dimension_semantics=("parallel",),     # shards token tiles across TCs (v7x)
            vmem_limit_bytes=32 * 1024 * 1024,
        ),
    )(idx2d, tab)

    # Unpack the lane-dense slab back to (..., D): pure layout plumbing.
    out = out.reshape(-1, D)[:N]
    return out.reshape(out_shape)


def init_params(embedding_dim, key):
    """Deterministic init matching nn.Embedding(6, D, padding_idx=-1):
    normal weights with the padding row (index 5) zeroed."""
    w = jax.random.normal(key, (VOCAB, embedding_dim), dtype=jnp.float32)
    w = w.at[VOCAB - 1].set(0.0)
    return w
    # TODO(synk): padding_idx also freezes the gradient of row 5 in PyTorch;
    # only the forward pass is implemented here.


if __name__ == "__main__":
    key = jax.random.PRNGKey(0)
    k_tbl, k_idx = jax.random.split(key)

    B, S = 2, 8
    for D in (32, 128):                 # packed (P=4) and already-lane-dense (P=1) paths
        table = init_params(D, k_tbl)
        indices = jax.random.randint(k_idx, (B, S), 0, VOCAB, dtype=jnp.int32)

        out = jax.block_until_ready(cigar_embedding(indices, table))

        ref = jnp.take(table, indices, axis=0)
        assert out.shape == (B, S, D)
        assert jnp.allclose(out, ref, atol=1e-6), f"mismatch vs reference (D={D})"

    print("KERNEL_OK")
</pallas_src>

<mosaic_0001>
module attributes {stable_mosaic.version = 11 : i64} {
  func.func @_embed_kernel(%arg0: i32, %arg1: memref<8x4xi32, #tpu.memory_space<vmem>>, %arg2: memref<8x128xf32, #tpu.memory_space<vmem>>, %arg3: memref<8x128xf32, #tpu.memory_space<vmem>>) attributes {dimension_semantics = [#tpu.dimension_semantics<parallel>], iteration_bounds = array<i64: 1>, scalar_prefetch = 0 : i64, scratch_operands = 0 : i64, tpu.core_type = #tpu.core_type<tc>, window_params = [{transform_indices = @transform_0, window_bounds = array<i64: 8, 4>}, {pipeline_mode = #tpu.pipeline_mode<synchronous>, transform_indices = @transform_1, window_bounds = array<i64: 8, 128>}, {transform_indices = @transform_2, window_bounds = array<i64: 8, 128>}]} {
    %c0 = arith.constant 0 : index
    %c0_0 = arith.constant 0 : index
    %0 = vector.load %arg1[%c0, %c0_0] : memref<8x4xi32, #tpu.memory_space<vmem>>, vector<8x4xi32>
    %c0_i32 = arith.constant 0 : i32
    %1 = vector.broadcast %c0_i32 : i32 to vector<8x4xi32>
    %2 = arith.cmpi slt, %0, %1 : vector<8x4xi32>
    %c5_i32 = arith.constant 5 : i32
    %3 = vector.broadcast %c5_i32 : i32 to vector<8x4xi32>
    %4 = arith.select %2, %3, %0 : vector<8x4xi1>, vector<8x4xi32>
    %5 = tpu.iota {dimensions = array<i32: 1>} : vector<8x128xi32>
    %c5_i32_1 = arith.constant 5 : i32
    %6 = vector.broadcast %c5_i32_1 : i32 to vector<8x128xi32>
    %c0_i32_2 = arith.constant 0 : i32
    %7 = vector.broadcast %c0_i32_2 : i32 to vector<8x128xi32>
    %8 = arith.cmpi sge, %5, %7 : vector<8x128xi32>
    %c32_i32 = arith.constant 32 : i32
    %9 = vector.broadcast %c32_i32 : i32 to vector<8x128xi32>
    %10 = arith.cmpi slt, %5, %9 : vector<8x128xi32>
    %11 = arith.andi %8, %10 : vector<8x128xi1>
    %12 = vector.extract_strided_slice %4 {offsets = [0, 0], sizes = [8, 1], strides = [1, 1]} : vector<8x4xi32> to vector<8x1xi32>
    %13 = vector.shape_cast %12 : vector<8x1xi32> to vector<8x1xi32>
    %14 = vector.broadcast %13 : vector<8x1xi32> to vector<8x128xi32>
    %15 = arith.select %11, %14, %6 : vector<8x128xi1>, vector<8x128xi32>
    %c32_i32_3 = arith.constant 32 : i32
    %16 = vector.broadcast %c32_i32_3 : i32 to vector<8x128xi32>
    %17 = arith.cmpi sge, %5, %16 : vector<8x128xi32>
    %c64_i32 = arith.constant 64 : i32
    %18 = vector.broadcast %c64_i32 : i32 to vector<8x128xi32>
    %19 = arith.cmpi slt, %5, %18 : vector<8x128xi32>
    %20 = arith.andi %17, %19 : vector<8x128xi1>
    %21 = vector.extract_strided_slice %4 {offsets = [0, 1], sizes = [8, 1], strides = [1, 1]} : vector<8x4xi32> to vector<8x1xi32>
    %22 = vector.shape_cast %21 : vector<8x1xi32> to vector<8x1xi32>
    %23 = vector.broadcast %22 : vector<8x1xi32> to vector<8x128xi32>
    %24 = arith.select %20, %23, %15 : vector<8x128xi1>, vector<8x128xi32>
    %c64_i32_4 = arith.constant 64 : i32
    %25 = vector.broadcast %c64_i32_4 : i32 to vector<8x128xi32>
    %26 = arith.cmpi sge, %5, %25 : vector<8x128xi32>
    %c96_i32 = arith.constant 96 : i32
    %27 = vector.broadcast %c96_i32 : i32 to vector<8x128xi32>
    %28 = arith.cmpi slt, %5, %27 : vector<8x128xi32>
    %29 = arith.andi %26, %28 : vector<8x128xi1>
    %30 = vector.extract_strided_slice %4 {offsets = [0, 2], sizes = [8, 1], strides = [1, 1]} : vector<8x4xi32> to vector<8x1xi32>
    %31 = vector.shape_cast %30 : vector<8x1xi32> to vector<8x1xi32>
    %32 = vector.broadcast %31 : vector<8x1xi32> to vector<8x128xi32>
    %33 = arith.select %29, %32, %24 : vector<8x128xi1>, vector<8x128xi32>
    %c96_i32_5 = arith.constant 96 : i32
    %34 = vector.broadcast %c96_i32_5 : i32 to vector<8x128xi32>
    %35 = arith.cmpi sge, %5, %34 : vector<8x128xi32>
    %c128_i32 = arith.constant 128 : i32
    %36 = vector.broadcast %c128_i32 : i32 to vector<8x128xi32>
    %37 = arith.cmpi slt, %5, %36 : vector<8x128xi32>
    %38 = arith.andi %35, %37 : vector<8x128xi1>
    %39 = vector.extract_strided_slice %4 {offsets = [0, 3], sizes = [8, 1], strides = [1, 1]} : vector<8x4xi32> to vector<8x1xi32>
    %40 = vector.shape_cast %39 : vector<8x1xi32> to vector<8x1xi32>
    %41 = vector.broadcast %40 : vector<8x1xi32> to vector<8x128xi32>
    %42 = arith.select %38, %41, %33 : vector<8x128xi1>, vector<8x128xi32>
    %cst = arith.constant 0.000000e+00 : f32
    %43 = vector.broadcast %cst : f32 to vector<8x128xf32>
    %c0_i32_6 = arith.constant 0 : i32
    %44 = vector.broadcast %c0_i32_6 : i32 to vector<8x128xi32>
    %45 = arith.cmpi eq, %42, %44 : vector<8x128xi32>
    %c0_7 = arith.constant 0 : index
    %c0_8 = arith.constant 0 : index
    %46 = vector.load %arg2[%c0_7, %c0_8] : memref<8x128xf32, #tpu.memory_space<vmem>>, vector<1x128xf32>
    %47 = vector.shape_cast %46 : vector<1x128xf32> to vector<128xf32>
    %48 = vector.shape_cast %47 : vector<128xf32> to vector<1x128xf32>
    %49 = vector.shape_cast %48 : vector<1x128xf32> to vector<1x128xf32>
    %50 = vector.broadcast %49 : vector<1x128xf32> to vector<8x128xf32>
    %51 = arith.select %45, %50, %43 : vector<8x128xi1>, vector<8x128xf32>
    %c1_i32 = arith.constant 1 : i32
    %52 = vector.broadcast %c1_i32 : i32 to vector<8x128xi32>
    %53 = arith.cmpi eq, %42, %52 : vector<8x128xi32>
    %c1 = arith.constant 1 : index
    %c0_9 = arith.constant 0 : index
    %54 = vector.load %arg2[%c1, %c0_9] : memref<8x128xf32, #tpu.memory_space<vmem>>, vector<1x128xf32>
    %55 = vector.shape_cast %54 : vector<1x128xf32> to vector<128xf32>
    %56 = vector.shape_cast %55 : vector<128xf32> to vector<1x128xf32>
    %57 = vector.shape_cast %56 : vector<1x128xf32> to vector<1x128xf32>
    %58 = vector.broadcast %57 : vector<1x128xf32> to vector<8x128xf32>
    %59 = arith.select %53, %58, %51 : vector<8x128xi1>, vector<8x128xf32>
    %c2_i32 = arith.constant 2 : i32
    %60 = vector.broadcast %c2_i32 : i32 to vector<8x128xi32>
    %61 = arith.cmpi eq, %42, %60 : vector<8x128xi32>
    %c2 = arith.constant 2 : index
    %c0_10 = arith.constant 0 : index
    %62 = vector.load %arg2[%c2, %c0_10] : memref<8x128xf32, #tpu.memory_space<vmem>>, vector<1x128xf32>
    %63 = vector.shape_cast %62 : vector<1x128xf32> to vector<128xf32>
    %64 = vector.shape_cast %63 : vector<128xf32> to vector<1x128xf32>
    %65 = vector.shape_cast %64 : vector<1x128xf32> to vector<1x128xf32>
    %66 = vector.broadcast %65 : vector<1x128xf32> to vector<8x128xf32>
    %67 = arith.select %61, %66, %59 : vector<8x128xi1>, vector<8x128xf32>
    %c3_i32 = arith.constant 3 : i32
    %68 = vector.broadcast %c3_i32 : i32 to vector<8x128xi32>
    %69 = arith.cmpi eq, %42, %68 : vector<8x128xi32>
    %c3 = arith.constant 3 : index
    %c0_11 = arith.constant 0 : index
    %70 = vector.load %arg2[%c3, %c0_11] : memref<8x128xf32, #tpu.memory_space<vmem>>, vector<1x128xf32>
    %71 = vector.shape_cast %70 : vector<1x128xf32> to vector<128xf32>
    %72 = vector.shape_cast %71 : vector<128xf32> to vector<1x128xf32>
    %73 = vector.shape_cast %72 : vector<1x128xf32> to vector<1x128xf32>
    %74 = vector.broadcast %73 : vector<1x128xf32> to vector<8x128xf32>
    %75 = arith.select %69, %74, %67 : vector<8x128xi1>, vector<8x128xf32>
    %c4_i32 = arith.constant 4 : i32
    %76 = vector.broadcast %c4_i32 : i32 to vector<8x128xi32>
    %77 = arith.cmpi eq, %42, %76 : vector<8x128xi32>
    %c4 = arith.constant 4 : index
    %c0_12 = arith.constant 0 : index
    %78 = vector.load %arg2[%c4, %c0_12] : memref<8x128xf32, #tpu.memory_space<vmem>>, vector<1x128xf32>
    %79 = vector.shape_cast %78 : vector<1x128xf32> to vector<128xf32>
    %80 = vector.shape_cast %79 : vector<128xf32> to vector<1x128xf32>
    %81 = vector.shape_cast %80 : vector<1x128xf32> to vector<1x128xf32>
    %82 = vector.broadcast %81 : vector<1x128xf32> to vector<8x128xf32>
    %83 = arith.select %77, %82, %75 : vector<8x128xi1>, vector<8x128xf32>
    %c5_i32_13 = arith.constant 5 : i32
    %84 = vector.broadcast %c5_i32_13 : i32 to vector<8x128xi32>
    %85 = arith.cmpi eq, %42, %84 : vector<8x128xi32>
    %c5 = arith.constant 5 : index
    %c0_14 = arith.constant 0 : index
    %86 = vector.load %arg2[%c5, %c0_14] : memref<8x128xf32, #tpu.memory_space<vmem>>, vector<1x128xf32>
    %87 = vector.shape_cast %86 : vector<1x128xf32> to vector<128xf32>
    %88 = vector.shape_cast %87 : vector<128xf32> to vector<1x128xf32>
    %89 = vector.shape_cast %88 : vector<1x128xf32> to vector<1x128xf32>
    %90 = vector.broadcast %89 : vector<1x128xf32> to vector<8x128xf32>
    %91 = arith.select %85, %90, %83 : vector<8x128xi1>, vector<8x128xf32>
    %c0_15 = arith.constant 0 : index
    %c0_16 = arith.constant 0 : index
    %92 = vector.load %arg3[%c0_15, %c0_16] : memref<8x128xf32, #tpu.memory_space<vmem>>, vector<8x128xf32>
    tpu.vector_store %arg3[%c0_15, %c0_16], %91 {strides = array<i32>} : memref<8x128xf32, #tpu.memory_space<vmem>>, vector<8x128xf32>,
    return
  }
  func.func @transform_0(%arg0: i32) -> (i32, i32) {
    %c0_i32 = arith.constant 0 : i32
    %c0_i32_0 = arith.constant 0 : i32
    return %arg0, %c0_i32 : i32, i32
  }
  func.func @transform_1(%arg0: i32) -> (i32, i32) {
    %c0_i32 = arith.constant 0 : i32
    %c0_i32_0 = arith.constant 0 : i32
    %c0_i32_1 = arith.constant 0 : i32
    return %c0_i32, %c0_i32_0 : i32, i32
  }
  func.func @transform_2(%arg0: i32) -> (i32, i32) {
    %c0_i32 = arith.constant 0 : i32
    %c0_i32_0 = arith.constant 0 : i32
    return %arg0, %c0_i32 : i32, i32
  }
}

</mosaic_0001>

<llo_original>
// kernel: tpu_custom_call.1
$region0: #{tpu_custom_call.1}
  #allocation0 [shape = 'u32[]', space=smem, size = 0x4, offset = 0x4, fixed_abs, tag = 'smem constant byte address 0x4 - core index']
  #allocation1 [shape = 'u32[72,128]{1,0:T(1,128)}', space=vmem, size = 0x9000, scoped, tag = 'internal scratch']
  %s0 = inlined_call_operand.vmem [shape: s32[8,4], index: 0, kind: input, shape index: {}]
  %s1 = inlined_call_operand.vmem [shape: f32[8,128], index: 1, kind: input, shape index: {}]
  %s2 = inlined_call_operand.hbm [shape: f32[8,128], index: 2, kind: output, shape index: {}]
  %s3 = sld [smem:[#allocation0]]
  $region18: #{tpu_custom_call.1} parent=0
    _
  %s5 = ssub.s32 1, %s3
  %s6 = scalar_select 0, %s5, %s3
  $region1: #{tpu_custom_call.1} parent=0
    #allocation2 [shape = 'u8[4096]{0}', space=vmem, size = 0x1000, scoped, tag = 'output window, operand 0, single buffered']
    #allocation3 [shape = 's32[1]{0}', space=sflag, size = 0x4, scoped, tag = 'scoped memory for tpu_custom_call.1']
    %7 = vsyncpa [#allocation3], 0
    // Predicated region
    $region2: #{tpu_custom_call.1} parent=1 // pred_check
      _
    $region3: #{tpu_custom_call.1} parent=1 // pred_check_branch
      %9 = sbr.rel (0) target = $region5
    $region4: #{tpu_custom_call.1} parent=1 // pred_region
      _
    $region5: #{tpu_custom_call.1} parent=1 // pred_fallthru
      _
    // Predicated region
    $region6: #{tpu_custom_call.1} parent=1 // pred_check
      _
    $region7: #{tpu_custom_call.1} parent=1 // pred_check_branch
      %11 = sbr.rel (0) target = $region9
    $region8: #{tpu_custom_call.1} parent=1 // pred_region
      _
    $region9: #{tpu_custom_call.1} parent=1 // pred_fallthru
      _
    %v12 = vld [vmem:[%s0] sm:$0xff]
    %vm13 = vcmp.lt.s32.totalorder %v12, 0
    %v14 = vsel %vm13, 5, %v12
    %v15 = vlaneseq
    %v16 = vand.u32 %v15, 127
    %vm17 = vcmp.ge.s32.totalorder %v16, 0
    %vm18 = vcmp.lt.s32.totalorder %v16, 32
    %vm19 = vmand %vm17, %vm18
    %20 = vset.pattern.permute.xlu0 0
    %21 = vperm.xlu0 %20, %v14
    %v22 = vpop.permute.xlu0 %21
    %v23 = vsel %vm19, %v22, 5
    %vm24 = vcmp.ge.s32.totalorder %v16, 32
    %vm25 = vcmp.lt.s32.totalorder %v16, 64
    %vm26 = vmand %vm24, %vm25
    %27 = vset.pattern.permute.xlu0 1
    %28 = vperm.xlu0 %27, %v14
    %v29 = vpop.permute.xlu0 %28
    %v30 = vsel %vm26, %v29, %v23
    %vm31 = vcmp.ge.s32.totalorder %v16, 64
    %vm32 = vcmp.lt.s32.totalorder %v16, 96
    %vm33 = vmand %vm31, %vm32
    %34 = vset.pattern.permute.xlu0 2
    %35 = vperm.xlu0 %34, %v14
    %v36 = vpop.permute.xlu0 %35
    %v37 = vsel %vm33, %v36, %v30
    %vm38 = vcmp.ge.s32.totalorder %v16, 96
    %vm39 = vcmp.lt.s32.totalorder %v16, 128
    %vm40 = vmand %vm38, %vm39
    %41 = vset.pattern.permute.xlu0 3
    %42 = vperm.xlu0 %41, %v14
    %v43 = vpop.permute.xlu0 %42
    %v44 = vsel %vm40, %v43, %v37
    %vm45 = vcmp.eq.s32.totalorder %v44, 0
    %v46 = vld [vmem:[%s1] sm:$0x1]
    %v47 = vperm.slane %v46, 0
    %v48 = vsel %vm45, %v47, 0.0
    %vm49 = vcmp.eq.s32.totalorder %v44, 1
    %v50 = vld [vmem:[%s1 + $0x1] sm:$0x1]
    %v51 = vperm.slane %v50, 0
    %v52 = vsel %vm49, %v51, %v48
    %vm53 = vcmp.eq.s32.totalorder %v44, 2
    %v54 = vld [vmem:[%s1 + $0x2] sm:$0x1]
    %v55 = vperm.slane %v54, 0
    %v56 = vsel %vm53, %v55, %v52
    %vm57 = vcmp.eq.s32.totalorder %v44, 3
    %v58 = vld [vmem:[%s1 + $0x3] sm:$0x1]
    %v59 = vperm.slane %v58, 0
    %v60 = vsel %vm57, %v59, %v56
    %vm61 = vcmp.eq.s32.totalorder %v44, 4
    %v62 = vld [vmem:[%s1 + $0x4] sm:$0x1]
    %v63 = vperm.slane %v62, 0
    %v64 = vsel %vm61, %v63, %v60
    %vm65 = vcmp.eq.s32.totalorder %v44, 5
    %v66 = vld [vmem:[%s1 + $0x5] sm:$0x1]
    %v67 = vperm.slane %v66, 0
    %v68 = vsel %vm65, %v67, %v64
    %69 = vst [vmem:[#allocation2] sm:$0xff] %v68
    // Predicated region
    $region10: #{tpu_custom_call.1} parent=1 // pred_check
      _
    $region11: #{tpu_custom_call.1} parent=1 // pred_check_branch
      %71 = sbr.rel (0) target = $region13
    $region12: #{tpu_custom_call.1} parent=1 // pred_region
      %73 = vsyncadd [#allocation3], 0
      %s75 = sshll.u32 [#allocation2], 4
      %s76 = int_to_ptr.vmem [resolvable:$true] %s75
      %s77 = sshll.u32 %s2, 4
      %s78 = int_to_ptr.hbm [resolvable:$true] %s77
      %80 = dma.vmem_to_hbm [thread:$0]  %s76, 128, %s78, [#allocation3]
    $region13: #{tpu_custom_call.1} parent=1 // pred_fallthru
      _
    // Predicated region
    $region14: #{tpu_custom_call.1} parent=1 // pred_check
      _
    $region15: #{tpu_custom_call.1} parent=1 // pred_check_branch
      %82 = sbr.rel (0) target = $region17
    $region16: #{tpu_custom_call.1} parent=1 // pred_region
      %84 = dma.done [#allocation3], 128
    $region17: #{tpu_custom_call.1} parent=1 // pred_fallthru
      _
    %85 = vsyncpa [#allocation3], 1

</llo_original>
